<compile_context>
chip_gen: v5e
topology: v5e:2x2
jax: 0.10.0
libtpu: 0.0.40
codegen_flags: <defaults>
</compile_context>

<pallas_src>
import functools

import jax
import jax.numpy as jnp
from jax.experimental import pallas as pl
from jax.experimental.pallas import tpu as pltpu


def _round_up(x: int, m: int) -> int:
    return ((x + m - 1) // m) * m


def _make_cluster_ff_kernel(num_layers: int, num_clusters_pad: int, has_hidden: bool):
    """Kernel args: (cids_ref [Bp,1] i32, w0_ref [Cp,Dp], b_ref [L,Dp], [wh_ref [L-1,Dp,Dp]], out_ref [Bp,Dp])."""

    def kernel(cids_ref, w0_ref, b_ref, *rest):
        if has_hidden:
            wh_ref, out_ref = rest
        else:
            (out_ref,) = rest
            wh_ref = None

        bp = cids_ref.shape[0]

        # Layer 0: build the one-hot [Bp, Cp] in-kernel and feed the MXU.
        # (padded cluster columns are never selected; padded batch rows are discarded
        #  by the wrapper-side slice.)
        iota = jax.lax.broadcasted_iota(jnp.int32, (bp, num_clusters_pad), 1)
        onehot = (iota == cids_ref[...]).astype(jnp.float32)              # [Bp, Cp]
        z = jnp.dot(onehot, w0_ref[...], preferred_element_type=jnp.float32)
        h = jax.nn.sigmoid(z + b_ref[pl.ds(0, 1), :])                     # [Bp, Dp]

        # Hidden layers: plain MXU matmuls on the full lane-dense block.
        # TODO(synk): Dropout(p=0) between layers is identity at inference -> omitted.
        for l in range(1, num_layers):
            w = wh_ref[l - 1]                                             # [Dp, Dp] (= W_l^T, zero-padded)
            z = jnp.dot(h, w, preferred_element_type=jnp.float32)
            h = jax.nn.sigmoid(z + b_ref[pl.ds(l, 1), :])

        out_ref[...] = h.astype(out_ref.dtype)

    return kernel


def _ffnn_pallas(cids_2d, w0_t, biases, hidden_w_t, *, num_layers):
    """cids_2d: i32[Bp,1]; w0_t: f32[Cp,Dp]; biases: f32[L,Dp]; hidden_w_t: f32[L-1,Dp,Dp]|None."""
    bp = cids_2d.shape[0]
    cp, dp = w0_t.shape
    has_hidden = hidden_w_t is not None

    kernel = _make_cluster_ff_kernel(num_layers, cp, has_hidden)

    operands = [cids_2d, w0_t, biases]
    if has_hidden:
        operands.append(hidden_w_t)

    vmem_spec = pl.BlockSpec(memory_space=pltpu.MemorySpace.VMEM)  # whole array, resident

    return pl.pallas_call(
        kernel,
        out_shape=jax.ShapeDtypeStruct((bp, dp), jnp.float32),
        in_specs=[vmem_spec] * len(operands),
        out_specs=vmem_spec,
    )(*operands)


@functools.partial(jax.jit, static_argnames=("num_layers", "out_dim"))
def _cluster_forward(langs, lang_to_cluster, w0_t, biases, hidden_w_t, *, num_layers, out_dim):
    b = langs.shape[0]
    bp = _round_up(max(b, 1), 8)                       # 8-sublane-dense M dim
    cids = lang_to_cluster[langs]                      # table lookup inside the jitted graph
    cids_2d = jnp.zeros((bp, 1), jnp.int32).at[:b, 0].set(cids)
    out_pad = _ffnn_pallas(cids_2d, w0_t, biases, hidden_w_t, num_layers=num_layers)
    return out_pad[:b, :out_dim]


class ClusterFeaturePallas:
    """JAX/Pallas re-implementation of ClusterFeature (inference, dropout=0)."""

    def __init__(self, lang2idx, clusters, output_dim, ff_layers,
                 activation="sigmoid", key=None):
        assert activation == "sigmoid"
        if key is None:
            key = jax.random.PRNGKey(0)

        # Precompute lang-index -> cluster-id table once (no per-call dict lookups).
        lang_indices = sorted(lang2idx.keys())
        self.lang_to_cluster = jnp.array(
            [clusters[lang2idx[i]] for i in lang_indices], dtype=jnp.int32)
        # Matches the PyTorch module (len(set(...)); it implicitly assumes dense ids 0..C-1).
        self.num_clusters = len(set(clusters.values()))
        self.output_dim = output_dim
        self.ff_layers = ff_layers

        d = output_dim
        dp = _round_up(d, 128)                         # lane-dense feature dim
        cp = _round_up(self.num_clusters, 8)           # sublane-dense contraction dim
        self._dp, self._cp = dp, cp

        # PyTorch nn.Linear-style init: W [out, in], b [out] ~ U(-1/sqrt(in), 1/sqrt(in)).
        weights_t, biases = [], []
        in_dim = self.num_clusters
        for _ in range(ff_layers):
            key, wk, bk = jax.random.split(key, 3)
            bound = 1.0 / float(in_dim) ** 0.5
            w = jax.random.uniform(wk, (d, in_dim), jnp.float32, -bound, bound)
            bvec = jax.random.uniform(bk, (d,), jnp.float32, -bound, bound)
            weights_t.append(jnp.transpose(w))         # [in, out]
            biases.append(bvec)
            in_dim = d

        # Zero-pad everything to (Cp, Dp) / (Dp, Dp) / (L, Dp).  Zero padding keeps the
        # real output columns numerically identical to the unpadded computation.
        w0 = jnp.zeros((cp, dp), jnp.float32).at[:self.num_clusters, :d].set(weights_t[0])
        self.w0_t = w0
        self.biases = jnp.stack(
            [jnp.zeros((dp,), jnp.float32).at[:d].set(b) for b in biases], axis=0)  # [L, Dp]
        if ff_layers > 1:
            hw = [jnp.zeros((dp, dp), jnp.float32).at[:d, :d].set(wt) for wt in weights_t[1:]]
            self.hidden_w_t = jnp.stack(hw, axis=0)    # [L-1, Dp, Dp]
        else:
            self.hidden_w_t = None

    def __call__(self, lang):
        """lang: int / i32 scalar -> f32[output_dim], or i32[B] -> f32[B, output_dim]."""
        squeeze = jnp.ndim(lang) == 0
        langs = jnp.atleast_1d(jnp.asarray(lang, dtype=jnp.int32))
        out = _cluster_forward(langs, self.lang_to_cluster, self.w0_t,
                               self.biases, self.hidden_w_t,
                               num_layers=self.ff_layers, out_dim=self.output_dim)
        return out[0] if squeeze else out

    # Pure-JAX reference (layer-0 row gather == one-hot @ W0^T).
    def reference(self, lang):
        squeeze = jnp.ndim(lang) == 0
        langs = jnp.atleast_1d(jnp.asarray(lang, dtype=jnp.int32))
        cids = self.lang_to_cluster[langs]
        c, d = self.num_clusters, self.output_dim
        w0 = self.w0_t[:c, :d]
        h = jax.nn.sigmoid(w0[cids] + self.biases[0, :d][None, :])
        for l in range(1, self.ff_layers):
            w = self.hidden_w_t[l - 1][:d, :d]
            h = jax.nn.sigmoid(jnp.dot(h, w) + self.biases[l, :d][None, :])
        return h[0] if squeeze else h


if __name__ == "__main__":
    # Small, module-consistent shapes.
    num_langs = 10
    num_clusters = 8
    output_dim = 32
    ff_layers = 2

    # Synthetic deterministic cluster assignment (no file/pickle loading).
    lang2idx = {i: f"lang{i}" for i in range(num_langs)}            # idx -> name
    clusters = {f"lang{i}": i % num_clusters for i in range(num_langs)}

    mod = ClusterFeaturePallas(lang2idx, clusters, output_dim, ff_layers,
                               activation="sigmoid", key=jax.random.PRNGKey(0))

    # Single-language path (matches the PyTorch module's forward signature).
    lang = 3                                                        # <int64> language id
    out1 = jax.block_until_ready(mod(lang))
    ref1 = mod.reference(lang)
    assert out1.shape == (output_dim,)
    assert out1.dtype == jnp.float32
    assert jnp.allclose(out1, ref1, atol=1e-5, rtol=1e-5)

    # Batched path: one kernel launch, one in-kernel one-hot gather + matmul for all langs.
    langs = jnp.arange(num_langs, dtype=jnp.int32)
    out_b = jax.block_until_ready(mod(langs))
    ref_b = mod.reference(langs)
    assert out_b.shape == (num_langs, output_dim)
    assert jnp.allclose(out_b, ref_b, atol=1e-5, rtol=1e-5)

    print("KERNEL_OK")
</pallas_src>

<mosaic_0001>
module attributes {stable_mosaic.version = 11 : i64} {
  func.func @kernel(%arg0: memref<8x1xi32, #tpu.memory_space<vmem>>, %arg1: memref<8x128xf32, #tpu.memory_space<vmem>>, %arg2: memref<2x128xf32, #tpu.memory_space<vmem>>, %arg3: memref<1x128x128xf32, #tpu.memory_space<vmem>>, %arg4: memref<8x128xf32, #tpu.memory_space<vmem>>) attributes {dimension_semantics = [], scalar_prefetch = 0 : i64, scratch_operands = 0 : i64, tpu.core_type = #tpu.core_type<tc>} {
    %0 = tpu.iota {dimensions = array<i32: 1>} : vector<8x8xi32>
    %c0 = arith.constant 0 : index
    %c0_0 = arith.constant 0 : index
    %1 = vector.load %arg0[%c0, %c0_0] : memref<8x1xi32, #tpu.memory_space<vmem>>, vector<8x1xi32>
    %2 = vector.broadcast %1 : vector<8x1xi32> to vector<8x8xi32>
    %3 = arith.cmpi eq, %0, %2 : vector<8x8xi32>
    %4 = arith.extui %3 : vector<8x8xi1> to vector<8x8xi32>
    %5 = arith.sitofp %4 : vector<8x8xi32> to vector<8x8xf32>
    %c0_1 = arith.constant 0 : index
    %c0_2 = arith.constant 0 : index
    %6 = vector.load %arg1[%c0_1, %c0_2] : memref<8x128xf32, #tpu.memory_space<vmem>>, vector<8x128xf32>
    %cst = arith.constant dense<0.000000e+00> : vector<8x128xf32>
    %7 = tpu.matmul %5, %6, %cst {dimension_numbers = #tpu.dot_dimension_numbers<[1], [0], [0], [1], [0, 0, 1, 1], [], []>} : vector<8x8xf32>, vector<8x128xf32>, vector<8x128xf32> -> vector<8x128xf32>
    %c0_3 = arith.constant 0 : index
    %c0_4 = arith.constant 0 : index
    %8 = vector.load %arg2[%c0_3, %c0_4] : memref<2x128xf32, #tpu.memory_space<vmem>>, vector<1x128xf32>
    %9 = vector.broadcast %8 : vector<1x128xf32> to vector<8x128xf32>
    %10 = arith.addf %7, %9 : vector<8x128xf32>
    %11 = arith.negf %10 : vector<8x128xf32>
    %12 = math.exp %11 : vector<8x128xf32>
    %cst_5 = arith.constant 1.000000e+00 : f32
    %13 = vector.broadcast %cst_5 : f32 to vector<8x128xf32>
    %14 = arith.addf %13, %12 : vector<8x128xf32>
    %15 = arith.divf %13, %14 : vector<8x128xf32>
    %c0_6 = arith.constant 0 : index
    %c0_7 = arith.constant 0 : index
    %c0_8 = arith.constant 0 : index
    %16 = vector.load %arg3[%c0_6, %c0_7, %c0_8] : memref<1x128x128xf32, #tpu.memory_space<vmem>>, vector<1x128x128xf32>
    %17 = vector.shape_cast %16 : vector<1x128x128xf32> to vector<128x128xf32>
    %cst_9 = arith.constant dense<0.000000e+00> : vector<8x128xf32>
    %18 = tpu.matmul %15, %17, %cst_9 {dimension_numbers = #tpu.dot_dimension_numbers<[1], [0], [0], [1], [0, 0, 1, 1], [], []>} : vector<8x128xf32>, vector<128x128xf32>, vector<8x128xf32> -> vector<8x128xf32>
    %c1 = arith.constant 1 : index
    %c0_10 = arith.constant 0 : index
    %19 = vector.load %arg2[%c1, %c0_10] : memref<2x128xf32, #tpu.memory_space<vmem>>, vector<1x128xf32>
    %20 = vector.broadcast %19 : vector<1x128xf32> to vector<8x128xf32>
    %21 = arith.addf %18, %20 : vector<8x128xf32>
    %22 = arith.negf %21 : vector<8x128xf32>
    %23 = math.exp %22 : vector<8x128xf32>
    %cst_11 = arith.constant 1.000000e+00 : f32
    %24 = vector.broadcast %cst_11 : f32 to vector<8x128xf32>
    %25 = arith.addf %24, %23 : vector<8x128xf32>
    %26 = arith.divf %24, %25 : vector<8x128xf32>
    %c0_12 = arith.constant 0 : index
    %c0_13 = arith.constant 0 : index
    %27 = vector.load %arg4[%c0_12, %c0_13] : memref<8x128xf32, #tpu.memory_space<vmem>>, vector<8x128xf32>
    tpu.vector_store %arg4[%c0_12, %c0_13], %26 {strides = array<i32>} : memref<8x128xf32, #tpu.memory_space<vmem>>, vector<8x128xf32>,
    return
  }
}

</mosaic_0001>

<llo_original>
// kernel: _cluster_forward.1
$region0: #{_cluster_forward.1}
  #allocation0 [shape = 'u32[]', space=smem, size = 0x4, offset = 0x4, fixed_abs, tag = 'smem constant byte address 0x4 - core index']
  #allocation1 [shape = 'u32[72,128]{1,0:T(1,128)}', space=vmem, size = 0x9000, scoped, tag = 'internal scratch']
  %s0 = inlined_call_operand.vmem [shape: s32[8,1], index: 0, kind: input, shape index: {}]
  %s1 = inlined_call_operand.vmem [shape: f32[8,128], index: 1, kind: input, shape index: {}]
  %s2 = inlined_call_operand.vmem [shape: f32[2,128], index: 2, kind: input, shape index: {}]
  %s3 = inlined_call_operand.hbm [shape: f32[1,128,128], index: 3, kind: input, shape index: {}]
  %s4 = inlined_call_operand.vmem [shape: f32[8,128], index: 4, kind: output, shape index: {}]
  %s5 = sld [smem:[#allocation0]]
  $region30: #{_cluster_forward.1} parent=0
    _
  %s7 = ssub.s32 1, %s5
  %s8 = scalar_select 0, %s7, %s5
  $region1: #{_cluster_forward.1} parent=0
    #allocation2 [shape = 'u8[65536]{0}', space=vmem, size = 0x10000, scoped, tag = 'input window, operand 3, single buffered']
    #allocation3 [shape = 's32[1]{0}', space=sflag, size = 0x4, scoped, tag = 'scoped memory for _cluster_forward.1']
    %9 = vsyncpa [#allocation3], 0
    // Predicated region
    $region2: #{_cluster_forward.1} parent=1 // pred_check
      _
    $region3: #{_cluster_forward.1} parent=1 // pred_check_branch
      %11 = sbr.rel (0) target = $region5
    $region4: #{_cluster_forward.1} parent=1 // pred_region
      _
    $region5: #{_cluster_forward.1} parent=1 // pred_fallthru
      _
    // Predicated region
    $region6: #{_cluster_forward.1} parent=1 // pred_check
      _
    $region7: #{_cluster_forward.1} parent=1 // pred_check_branch
      %13 = sbr.rel (0) target = $region9
    $region8: #{_cluster_forward.1} parent=1 // pred_region
      _
    $region9: #{_cluster_forward.1} parent=1 // pred_fallthru
      _
    // Predicated region
    $region10: #{_cluster_forward.1} parent=1 // pred_check
      _
    $region11: #{_cluster_forward.1} parent=1 // pred_check_branch
      %15 = sbr.rel (0) target = $region13
    $region12: #{_cluster_forward.1} parent=1 // pred_region
      _
    $region13: #{_cluster_forward.1} parent=1 // pred_fallthru
      _
    // Predicated region
    $region14: #{_cluster_forward.1} parent=1 // pred_check
      _
    $region15: #{_cluster_forward.1} parent=1 // pred_check_branch
      %17 = sbr.rel (0) target = $region17
    $region16: #{_cluster_forward.1} parent=1 // pred_region
      %19 = vsyncadd [#allocation3], 0
      %s20 = sshll.u32 %s3, 4
      %s21 = int_to_ptr.hbm [resolvable:$true] %s20
      %s22 = sshll.u32 [#allocation2], 4
      %s23 = int_to_ptr.vmem [resolvable:$true] %s22
      %28 = dma.hbm_to_vmem [thread:$0]  %s21, 2048, %s23, [#allocation3], 128, 128, 8
    $region17: #{_cluster_forward.1} parent=1 // pred_fallthru
      _
    // Predicated region
    $region18: #{_cluster_forward.1} parent=1 // pred_check
      _
    $region19: #{_cluster_forward.1} parent=1 // pred_check_branch
      %30 = sbr.rel (0) target = $region21
    $region20: #{_cluster_forward.1} parent=1 // pred_region
      %32 = dma.done [#allocation3], 2048
    $region21: #{_cluster_forward.1} parent=1 // pred_fallthru
      _
    %v33 = vlaneseq
    %v34 = vand.u32 %v33, 127
    %v35 = vld [vmem:[%s0] sm:$0xff]
    %36 = vset.pattern.permute.xlu0 0
    %37 = vperm.xlu0 %36, %v35
    %v38 = vpop.permute.xlu0 %37
    %vm39 = vcmp.eq.s32.totalorder %v34, %v38
    %v40 = vsel %vm39, 1, 0
    %v41 = vcvt.s32.f32 %v40
    %v42 = vld [vmem:[%s1] sm:$0xff]
    %v43 = vld [vmem:[%s2] sm:$0x1]
    %v44 = vperm.slane %v43, 0
    %vm45 = vcmask 64512
    %v47 = vsel %vm45, %v41, 0
    %49 = vmatpush.msra.mxu0 0.0
    %50 = vmatpush.msra.mxu0 0.0
    %51 = vmatpush.msra.mxu0 0.0
    %52 = vmatpush.msra.mxu0 0.0
    %53 = vmatpush.msra.mxu0 0.0
    %54 = vmatpush.msra.mxu0 0.0
    %55 = vmatpush.msra.mxu0 0.0
    %56 = vmatpush.msra.mxu0 0.0
    %57 = vmatpush.msra.mxu0 0.0
    %58 = vmatpush.msra.mxu0 0.0
    %59 = vmatpush.msra.mxu0 0.0
    %60 = vmatpush.msra.mxu0 0.0
    %61 = vmatpush.msra.mxu0 0.0
    %62 = vmatpush.msra.mxu0 0.0
    %63 = vmatpush.msra.mxu0 0.0
    %64 = vmatpush.msra.mxu0 %v42
    %65 = vmatmul.f32.gmra.mxu0 %v47
    %v66 = vpop.f32.mrf.mxu0
    %v67 = vadd.f32 %v44, %v66
    %68 = vdwg.mxu0
    %v69 = vxor.u32 %v67, 2147483648
    %v70 = vmul.f32 %v69, 1.442695
    %v71 = vpow.pop %v70
    %v72 = vadd.f32 %v71, 1.0
    %v73 = vrcp.pop %v72
    %v74 = vmul.f32 %v72, %v73
    %v75 = vsub.f32 1.0, %v74
    %v76 = vmul.f32 %v73, %v75
    %v77 = vadd.f32 %v73, %v76
    %vm78 = vweird.f32 %v72
    %vm79 = vweird.f32 %v73
    %vm80 = vmor %vm78, %vm79
    %v81 = vsel %vm80, %v73, %v77
    %v82 = vand.u32 2147483647, %v72
    %vm83 = vcmp.eq.f32.partialorder %v82, 8.507059e+37
    %v84 = vand.u32 %v72, 2147483648
    %v85 = vor.u32 1.1754944e-38, %v84
    %v86 = vsel %vm83, %v85, %v81
    %v87 = vmul.f32 1.0, %v86
    %v88 = vld [vmem:[#allocation2] sm:$0xff]
    %v89 = vld [vmem:[#allocation2 + $0x8] sm:$0xff]
    %v90 = vld [vmem:[#allocation2 + $0x10] sm:$0xff]
    %v91 = vld [vmem:[#allocation2 + $0x18] sm:$0xff]
    %v92 = vld [vmem:[#allocation2 + $0x20] sm:$0xff]
    %v93 = vld [vmem:[#allocation2 + $0x28] sm:$0xff]
    %v94 = vld [vmem:[#allocation2 + $0x30] sm:$0xff]
    %v95 = vld [vmem:[#allocation2 + $0x38] sm:$0xff]
    %v96 = vld [vmem:[#allocation2 + $0x40] sm:$0xff]
    %v97 = vld [vmem:[#allocation2 + $0x48] sm:$0xff]
    %v98 = vld [vmem:[#allocation2 + $0x50] sm:$0xff]
    %v99 = vld [vmem:[#allocation2 + $0x58] sm:$0xff]
    %v100 = vld [vmem:[#allocation2 + $0x60] sm:$0xff]
    %v101 = vld [vmem:[#allocation2 + $0x68] sm:$0xff]
    %v102 = vld [vmem:[#allocation2 + $0x70] sm:$0xff]
    %v103 = vld [vmem:[#allocation2 + $0x78] sm:$0xff]
    %v104 = vld [vmem:[%s2 + $0x1] sm:$0x1]
    %v105 = vperm.slane %v104, 0
    %106 = vmatpush.msra.mxu0 %v103
    %107 = vmatpush.msra.mxu0 %v102
    %108 = vmatpush.msra.mxu0 %v101
    %109 = vmatpush.msra.mxu0 %v100
    %110 = vmatpush.msra.mxu0 %v99
    %111 = vmatpush.msra.mxu0 %v98
    %112 = vmatpush.msra.mxu0 %v97
    %113 = vmatpush.msra.mxu0 %v96
    %114 = vmatpush.msra.mxu0 %v95
    %115 = vmatpush.msra.mxu0 %v94
    %116 = vmatpush.msra.mxu0 %v93
    %117 = vmatpush.msra.mxu0 %v92
    %118 = vmatpush.msra.mxu0 %v91
    %119 = vmatpush.msra.mxu0 %v90
    %120 = vmatpush.msra.mxu0 %v89
    %121 = vmatpush.msra.mxu0 %v88
    %122 = vmatmul.f32.gmra.mxu0 %v87
    %v123 = vpop.f32.mrf.mxu0
    %v124 = vadd.f32 %v105, %v123
    %125 = vdwg.mxu0
    %v126 = vxor.u32 %v124, 2147483648
    %v127 = vmul.f32 %v126, 1.442695
    %v128 = vpow.pop %v127
    %v129 = vadd.f32 %v128, 1.0
    %v130 = vrcp.pop %v129
    %v131 = vmul.f32 %v129, %v130
    %v132 = vsub.f32 1.0, %v131
    %v133 = vmul.f32 %v130, %v132
    %v134 = vadd.f32 %v130, %v133
    %vm135 = vweird.f32 %v129
    %vm136 = vweird.f32 %v130
    %vm137 = vmor %vm135, %vm136
    %v138 = vsel %vm137, %v130, %v134
    %v139 = vand.u32 2147483647, %v129
    %vm140 = vcmp.eq.f32.partialorder %v139, 8.507059e+37
    %v141 = vand.u32 %v129, 2147483648
    %v142 = vor.u32 1.1754944e-38, %v141
    %v143 = vsel %vm140, %v142, %v138
    %v144 = vmul.f32 1.0, %v143
    %145 = vst [vmem:[%s4] sm:$0xff] %v144
    // Predicated region
    $region22: #{_cluster_forward.1} parent=1 // pred_check
      _
    $region23: #{_cluster_forward.1} parent=1 // pred_check_branch
      %147 = sbr.rel (0) target = $region25
    $region24: #{_cluster_forward.1} parent=1 // pred_region
      _
    $region25: #{_cluster_forward.1} parent=1 // pred_fallthru
      _
    // Predicated region
    $region26: #{_cluster_forward.1} parent=1 // pred_check
      _
    $region27: #{_cluster_forward.1} parent=1 // pred_check_branch
      %149 = sbr.rel (0) target = $region29
    $region28: #{_cluster_forward.1} parent=1 // pred_region
      _
    $region29: #{_cluster_forward.1} parent=1 // pred_fallthru
      _
    %150 = vsyncpa [#allocation3], 1

</llo_original>
